<compile_context>
chip_gen: v5e
topology: v5e:2x2
jax: 0.10.0
libtpu: 0.0.40
codegen_flags: <defaults>
</compile_context>

<pallas_src>
import jax
import jax.numpy as jnp
from jax.experimental import pallas as pl
from jax.experimental.pallas import tpu as pltpu

NORM2_EPS = 1e-5    # nn.LayerNorm default eps (self.norm2)
FFN_LN_EPS = 1e-6   # config.layer_norm_eps (self.mlp.ffn_ln)


def _layernorm_f32(x, gamma, beta, eps):
    """Row LayerNorm in f32 with two-pass statistics (matches PyTorch numerics)."""
    mu = jnp.mean(x, axis=-1, keepdims=True)
    xc = x - mu
    var = jnp.mean(xc * xc, axis=-1, keepdims=True)
    return xc * jax.lax.rsqrt(var + eps) * gamma + beta


def _cross_output_kernel(hs_ref, res_ref,
                         wo_ref, bo_ref, g2_ref, beta2_ref,
                         w1_ref, b1_ref, w3_ref, b3_ref,
                         gffn_ref, betaffn_ref,
                         w2_ref, b2_ref,
                         o_ref):
    # Matmul operands in the (possibly bf16) weight dtype; accumulation and all
    # LayerNorm / SiLU elementwise math in f32.
    cdt = wo_ref.dtype

    # out_proj + residual (f32 accumulation on the MXU); hs already in compute dtype.
    r = (res_ref[...].astype(jnp.float32)
         + jnp.dot(hs_ref[...], wo_ref[...], preferred_element_type=jnp.float32)
         + bo_ref[...])

    # norm2 over the hidden dim
    n = _layernorm_f32(r, g2_ref[...], beta2_ref[...], NORM2_EPS)
    n_c = n.astype(cdt)

    # Gate projection; SiLU applied and consumed immediately (no fused (tm, 2I)
    # temporary, no slice materializations).
    h1 = jnp.dot(n_c, w1_ref[...], preferred_element_type=jnp.float32) + b1_ref[...]
    h = h1 * jax.nn.sigmoid(h1)
    # Up projection, multiplied in place.
    h = h * (jnp.dot(n_c, w3_ref[...], preferred_element_type=jnp.float32) + b3_ref[...])

    # ffn_ln over the intermediate dim
    hn = _layernorm_f32(h, gffn_ref[...], betaffn_ref[...], FFN_LN_EPS)

    # down projection + residual
    out = r + jnp.dot(hn.astype(cdt), w2_ref[...],
                      preferred_element_type=jnp.float32) + b2_ref[...]
    o_ref[...] = out.astype(o_ref.dtype)


def _round_up(x, m):
    return ((x + m - 1) // m) * m


def _choose_tm(m_rows, tm_max=256, min_total_steps=8):
    """MXU-friendly row tile that still yields >= min_total_steps grid steps
    (>= 4 per TensorCore on v7x) so activation DMA overlaps compute."""
    if m_rows >= min_total_steps * 128:
        # Large problems: multiples of 128 match the MXU feed (4x128 v5e, 2x256 v6e/v7x).
        tm = _round_up(pl.cdiv(m_rows, min_total_steps), 128)
    else:
        # Small problems: keep step count up; never below the 8-row sublane granule.
        tm = _round_up(max(1, pl.cdiv(m_rows, min_total_steps)), 8)
    return int(max(8, min(tm, tm_max)))


def _vmem_limit_bytes():
    """Generation-aware scoped-VMEM budget, leaving headroom below physical VMEM."""
    try:
        cap = int(pltpu.get_tpu_info().vmem_capacity_bytes)
    except Exception:
        cap = 64 * 1024 * 1024                     # conservative fallback (v7x per-TC)
    if cap >= 100 * 1024 * 1024:                   # v5e / v6e: 128 MiB physical
        return 100 * 1024 * 1024
    return 56 * 1024 * 1024                        # v7x: 64 MiB physical, keep headroom


def visual_abstractor_cross_output(hidden_states, input_tensor, params, *,
                                   tm_max=256, compute_dtype=None):
    """hidden_states, input_tensor: (B, S, H).
    params (math layout, i.e. PyTorch .weight.T):
      wo (H,H), bo (H,), g2 (H,), beta2 (H,),
      w1 (H,I), b1 (I,), w3 (H,I), b3 (I,), gffn (I,), betaffn (I,),
      w2 (I,H), b2 (H,).
    compute_dtype: dtype of the matmul operands; pass jnp.bfloat16 for production
    (strongly recommended on v5e).  Accumulation and LayerNorm math stay f32."""
    B, S, H = hidden_states.shape
    I = params["w1"].shape[1]
    M = B * S
    cdt = jnp.dtype(compute_dtype) if compute_dtype is not None \
        else jnp.dtype(hidden_states.dtype)

    tm = _choose_tm(M, tm_max)
    grid_m = pl.cdiv(M, tm)

    f32 = jnp.float32
    # hs is a matmul-only operand: pre-cast in the wrapper (halves its HBM traffic
    # and VMEM tile for bf16).  The residual stays in the activation dtype.
    hs2d = hidden_states.reshape(M, H).astype(cdt)
    it2d = input_tensor.reshape(M, H)

    wo = params["wo"].astype(cdt)
    w1 = params["w1"].astype(cdt)
    w3 = params["w3"].astype(cdt)
    w2 = params["w2"].astype(cdt)
    bo = params["bo"].reshape(1, H).astype(f32)
    b1 = params["b1"].reshape(1, I).astype(f32)
    b3 = params["b3"].reshape(1, I).astype(f32)
    b2 = params["b2"].reshape(1, H).astype(f32)
    g2 = params["g2"].reshape(1, H).astype(f32)
    beta2 = params["beta2"].reshape(1, H).astype(f32)
    gffn = params["gffn"].reshape(1, I).astype(f32)
    betaffn = params["betaffn"].reshape(1, I).astype(f32)

    row_spec = pl.BlockSpec((tm, H), lambda i: (i, 0))
    # Constant index_map => each weight/bias block is DMA'd to VMEM only once and
    # stays resident across the whole grid.  Buffered(1) drops the (never-used)
    # second pipeline buffer, halving resident-weight VMEM.
    full = lambda r, c: pl.BlockSpec((r, c), lambda i: (0, 0),
                                     pipeline_mode=pl.Buffered(1))

    w_bytes = jnp.dtype(cdt).itemsize
    act_bytes = jnp.dtype(hidden_states.dtype).itemsize
    cost = pl.CostEstimate(
        flops=int(2 * M * (H * H + 3 * H * I)),
        transcendentals=int(M * I),
        bytes_accessed=int(M * H * (w_bytes + 2 * act_bytes)
                           + (H * H + 3 * H * I) * w_bytes
                           + (4 * H + 4 * I) * 4),
    )

    out2d = pl.pallas_call(
        _cross_output_kernel,
        out_shape=jax.ShapeDtypeStruct((M, H), hidden_states.dtype),
        grid_spec=pltpu.PrefetchScalarGridSpec(
            num_scalar_prefetch=0,
            grid=(grid_m,),
            in_specs=[
                row_spec,            # hidden_states rows (compute dtype)
                row_spec,            # input_tensor (residual) rows
                full(H, H),          # wo
                full(1, H),          # bo
                full(1, H),          # norm2 gamma
                full(1, H),          # norm2 beta
                full(H, I),          # w1 (gate)
                full(1, I),          # b1
                full(H, I),          # w3 (up)
                full(1, I),          # b3
                full(1, I),          # ffn_ln gamma
                full(1, I),          # ffn_ln beta
                full(I, H),          # w2 (down)
                full(1, H),          # b2
            ],
            out_specs=pl.BlockSpec((tm, H), lambda i: (i, 0)),
        ),
        compiler_params=pltpu.CompilerParams(
            dimension_semantics=("parallel",),
            vmem_limit_bytes=_vmem_limit_bytes(),
        ),
        cost_estimate=cost,
    )(hs2d, it2d, wo, bo, g2, beta2, w1, b1, w3, b3, gffn, betaffn, w2, b2)

    return out2d.reshape(B, S, H)


# ----------------------------- pure-JAX reference -----------------------------

def _ln_ref(x, g, b, eps):
    mu = jnp.mean(x, axis=-1, keepdims=True)
    var = jnp.mean((x - mu) ** 2, axis=-1, keepdims=True)
    return (x - mu) / jnp.sqrt(var + eps) * g + b


def _reference(hidden_states, input_tensor, params):
    hs = hidden_states.astype(jnp.float32)
    r = input_tensor.astype(jnp.float32) + hs @ params["wo"] + params["bo"]
    n = _ln_ref(r, params["g2"], params["beta2"], NORM2_EPS)
    h1 = n @ params["w1"] + params["b1"]
    h3 = n @ params["w3"] + params["b3"]
    h = jax.nn.silu(h1) * h3
    hn = _ln_ref(h, params["gffn"], params["betaffn"], FFN_LN_EPS)
    out = r + hn @ params["w2"] + params["b2"]
    return out.astype(hidden_states.dtype)


if __name__ == "__main__":
    # Small config: hidden_size=32, intermediate_size=64, batch=2, seq=8.
    B, S, H, I = 2, 8, 32, 64

    key = jax.random.PRNGKey(0)
    k = jax.random.split(key, 12)
    # Deterministic synthetic params in math layout (in, out) == PyTorch weight.T.
    params = {
        "wo":      jax.random.normal(k[0], (H, H), jnp.float32) * 0.05,
        "bo":      jax.random.normal(k[1], (H,), jnp.float32) * 0.01,
        "g2":      1.0 + jax.random.normal(k[2], (H,), jnp.float32) * 0.01,
        "beta2":   jax.random.normal(k[3], (H,), jnp.float32) * 0.01,
        "w1":      jax.random.normal(k[4], (H, I), jnp.float32) * 0.05,
        "b1":      jax.random.normal(k[5], (I,), jnp.float32) * 0.01,
        "w3":      jax.random.normal(k[6], (H, I), jnp.float32) * 0.05,
        "b3":      jax.random.normal(k[7], (I,), jnp.float32) * 0.01,
        "gffn":    1.0 + jax.random.normal(k[8], (I,), jnp.float32) * 0.01,
        "betaffn": jax.random.normal(k[9], (I,), jnp.float32) * 0.01,
        "w2":      jax.random.normal(k[10], (I, H), jnp.float32) * 0.05,
        "b2":      jax.random.normal(k[11], (H,), jnp.float32) * 0.01,
    }

    hidden_states = jax.random.normal(jax.random.PRNGKey(42), (B, S, H), jnp.float32)
    input_tensor = jax.random.normal(jax.random.PRNGKey(7), (B, S, H), jnp.float32)

    ref = _reference(hidden_states, input_tensor, params)

    # f32 path: strict correctness check.
    out = visual_abstractor_cross_output(hidden_states, input_tensor, params)
    out = jax.block_until_ready(out)
    assert out.shape == (B, S, H)
    assert jnp.allclose(out, ref, atol=1e-4, rtol=1e-4), "f32 kernel mismatch vs reference"

    # bf16 matmul operands (f32 accumulation + f32 LayerNorm): loose sanity check.
    out_bf16 = visual_abstractor_cross_output(hidden_states, input_tensor, params,
                                              compute_dtype=jnp.bfloat16)
    out_bf16 = jax.block_until_ready(out_bf16)
    assert float(jnp.max(jnp.abs(out_bf16.astype(jnp.float32) - ref))) < 0.3, \
        "bf16 kernel too far from reference"

    print("KERNEL_OK")
</pallas_src>

<mosaic_0001>
module attributes {stable_mosaic.version = 11 : i64} {
  func.func @_cross_output_kernel(%arg0: i32, %arg1: memref<8x32xf32, #tpu.memory_space<vmem>>, %arg2: memref<8x32xf32, #tpu.memory_space<vmem>>, %arg3: memref<32x32xf32, #tpu.memory_space<vmem>>, %arg4: memref<1x32xf32, #tpu.memory_space<vmem>>, %arg5: memref<1x32xf32, #tpu.memory_space<vmem>>, %arg6: memref<1x32xf32, #tpu.memory_space<vmem>>, %arg7: memref<32x64xf32, #tpu.memory_space<vmem>>, %arg8: memref<1x64xf32, #tpu.memory_space<vmem>>, %arg9: memref<32x64xf32, #tpu.memory_space<vmem>>, %arg10: memref<1x64xf32, #tpu.memory_space<vmem>>, %arg11: memref<1x64xf32, #tpu.memory_space<vmem>>, %arg12: memref<1x64xf32, #tpu.memory_space<vmem>>, %arg13: memref<64x32xf32, #tpu.memory_space<vmem>>, %arg14: memref<1x32xf32, #tpu.memory_space<vmem>>, %arg15: memref<8x32xf32, #tpu.memory_space<vmem>>) attributes {dimension_semantics = [#tpu.dimension_semantics<parallel>], iteration_bounds = array<i64: 2>, scalar_prefetch = 0 : i64, scratch_operands = 0 : i64, tpu.core_type = #tpu.core_type<tc>, window_params = [{transform_indices = @transform_0, window_bounds = array<i64: 8, 32>}, {transform_indices = @transform_1, window_bounds = array<i64: 8, 32>}, {pipeline_mode = #tpu.pipeline_mode<synchronous>, transform_indices = @transform_2, window_bounds = array<i64: 32, 32>}, {pipeline_mode = #tpu.pipeline_mode<synchronous>, transform_indices = @transform_3, window_bounds = array<i64: 1, 32>}, {pipeline_mode = #tpu.pipeline_mode<synchronous>, transform_indices = @transform_4, window_bounds = array<i64: 1, 32>}, {pipeline_mode = #tpu.pipeline_mode<synchronous>, transform_indices = @transform_5, window_bounds = array<i64: 1, 32>}, {pipeline_mode = #tpu.pipeline_mode<synchronous>, transform_indices = @transform_6, window_bounds = array<i64: 32, 64>}, {pipeline_mode = #tpu.pipeline_mode<synchronous>, transform_indices = @transform_7, window_bounds = array<i64: 1, 64>}, {pipeline_mode = #tpu.pipeline_mode<synchronous>, transform_indices = @transform_8, window_bounds = array<i64: 32, 64>}, {pipeline_mode = #tpu.pipeline_mode<synchronous>, transform_indices = @transform_9, window_bounds = array<i64: 1, 64>}, {pipeline_mode = #tpu.pipeline_mode<synchronous>, transform_indices = @transform_10, window_bounds = array<i64: 1, 64>}, {pipeline_mode = #tpu.pipeline_mode<synchronous>, transform_indices = @transform_11, window_bounds = array<i64: 1, 64>}, {pipeline_mode = #tpu.pipeline_mode<synchronous>, transform_indices = @transform_12, window_bounds = array<i64: 64, 32>}, {pipeline_mode = #tpu.pipeline_mode<synchronous>, transform_indices = @transform_13, window_bounds = array<i64: 1, 32>}, {transform_indices = @transform_14, window_bounds = array<i64: 8, 32>}]} {
    %c0 = arith.constant 0 : index
    %c0_0 = arith.constant 0 : index
    %0 = vector.load %arg2[%c0, %c0_0] : memref<8x32xf32, #tpu.memory_space<vmem>>, vector<8x32xf32>
    %c0_1 = arith.constant 0 : index
    %c0_2 = arith.constant 0 : index
    %1 = vector.load %arg1[%c0_1, %c0_2] : memref<8x32xf32, #tpu.memory_space<vmem>>, vector<8x32xf32>
    %c0_3 = arith.constant 0 : index
    %c0_4 = arith.constant 0 : index
    %2 = vector.load %arg3[%c0_3, %c0_4] : memref<32x32xf32, #tpu.memory_space<vmem>>, vector<32x32xf32>
    %cst = arith.constant dense<0.000000e+00> : vector<8x32xf32>
    %3 = tpu.matmul %1, %2, %cst {dimension_numbers = #tpu.dot_dimension_numbers<[1], [0], [0], [1], [0, 0, 1, 1], [], []>} : vector<8x32xf32>, vector<32x32xf32>, vector<8x32xf32> -> vector<8x32xf32>
    %4 = arith.addf %0, %3 : vector<8x32xf32>
    %c0_5 = arith.constant 0 : index
    %c0_6 = arith.constant 0 : index
    %5 = vector.load %arg4[%c0_5, %c0_6] : memref<1x32xf32, #tpu.memory_space<vmem>>, vector<1x32xf32>
    %6 = vector.broadcast %5 : vector<1x32xf32> to vector<8x32xf32>
    %7 = arith.addf %4, %6 : vector<8x32xf32>
    %c0_7 = arith.constant 0 : index
    %c0_8 = arith.constant 0 : index
    %8 = vector.load %arg5[%c0_7, %c0_8] : memref<1x32xf32, #tpu.memory_space<vmem>>, vector<1x32xf32>
    %c0_9 = arith.constant 0 : index
    %c0_10 = arith.constant 0 : index
    %9 = vector.load %arg6[%c0_9, %c0_10] : memref<1x32xf32, #tpu.memory_space<vmem>>, vector<1x32xf32>
    %cst_11 = arith.constant dense<0.000000e+00> : vector<8xf32>
    %10 = vector.multi_reduction <add>, %7, %cst_11 [1] : vector<8x32xf32> to vector<8xf32>
    %11 = vector.shape_cast %10 : vector<8xf32> to vector<8x1xf32>
    %cst_12 = arith.constant 3.200000e+01 : f32
    %12 = vector.broadcast %cst_12 : f32 to vector<8x1xf32>
    %13 = arith.divf %11, %12 : vector<8x1xf32>
    %14 = vector.broadcast %13 : vector<8x1xf32> to vector<8x32xf32>
    %15 = arith.subf %7, %14 : vector<8x32xf32>
    %16 = arith.mulf %15, %15 : vector<8x32xf32>
    %cst_13 = arith.constant dense<0.000000e+00> : vector<8xf32>
    %17 = vector.multi_reduction <add>, %16, %cst_13 [1] : vector<8x32xf32> to vector<8xf32>
    %18 = vector.shape_cast %17 : vector<8xf32> to vector<8x1xf32>
    %cst_14 = arith.constant 3.200000e+01 : f32
    %19 = vector.broadcast %cst_14 : f32 to vector<8x1xf32>
    %20 = arith.divf %18, %19 : vector<8x1xf32>
    %cst_15 = arith.constant 9.99999974E-6 : f32
    %21 = vector.broadcast %cst_15 : f32 to vector<8x1xf32>
    %22 = arith.addf %20, %21 : vector<8x1xf32>
    %23 = math.rsqrt %22 : vector<8x1xf32>
    %24 = vector.broadcast %23 : vector<8x1xf32> to vector<8x32xf32>
    %25 = arith.mulf %15, %24 : vector<8x32xf32>
    %26 = vector.broadcast %8 : vector<1x32xf32> to vector<8x32xf32>
    %27 = arith.mulf %25, %26 : vector<8x32xf32>
    %28 = vector.broadcast %9 : vector<1x32xf32> to vector<8x32xf32>
    %29 = arith.addf %27, %28 : vector<8x32xf32>
    %c0_16 = arith.constant 0 : index
    %c0_17 = arith.constant 0 : index
    %30 = vector.load %arg7[%c0_16, %c0_17] : memref<32x64xf32, #tpu.memory_space<vmem>>, vector<32x64xf32>
    %cst_18 = arith.constant dense<0.000000e+00> : vector<8x64xf32>
    %31 = tpu.matmul %29, %30, %cst_18 {dimension_numbers = #tpu.dot_dimension_numbers<[1], [0], [0], [1], [0, 0, 1, 1], [], []>} : vector<8x32xf32>, vector<32x64xf32>, vector<8x64xf32> -> vector<8x64xf32>
    %c0_19 = arith.constant 0 : index
    %c0_20 = arith.constant 0 : index
    %32 = vector.load %arg8[%c0_19, %c0_20] : memref<1x64xf32, #tpu.memory_space<vmem>>, vector<1x64xf32>
    %33 = vector.broadcast %32 : vector<1x64xf32> to vector<8x64xf32>
    %34 = arith.addf %31, %33 : vector<8x64xf32>
    %35 = arith.negf %34 : vector<8x64xf32>
    %36 = math.exp %35 : vector<8x64xf32>
    %cst_21 = arith.constant 1.000000e+00 : f32
    %37 = vector.broadcast %cst_21 : f32 to vector<8x64xf32>
    %38 = arith.addf %37, %36 : vector<8x64xf32>
    %39 = arith.divf %37, %38 : vector<8x64xf32>
    %40 = arith.mulf %34, %39 : vector<8x64xf32>
    %c0_22 = arith.constant 0 : index
    %c0_23 = arith.constant 0 : index
    %41 = vector.load %arg9[%c0_22, %c0_23] : memref<32x64xf32, #tpu.memory_space<vmem>>, vector<32x64xf32>
    %cst_24 = arith.constant dense<0.000000e+00> : vector<8x64xf32>
    %42 = tpu.matmul %29, %41, %cst_24 {dimension_numbers = #tpu.dot_dimension_numbers<[1], [0], [0], [1], [0, 0, 1, 1], [], []>} : vector<8x32xf32>, vector<32x64xf32>, vector<8x64xf32> -> vector<8x64xf32>
    %c0_25 = arith.constant 0 : index
    %c0_26 = arith.constant 0 : index
    %43 = vector.load %arg10[%c0_25, %c0_26] : memref<1x64xf32, #tpu.memory_space<vmem>>, vector<1x64xf32>
    %44 = vector.broadcast %43 : vector<1x64xf32> to vector<8x64xf32>
    %45 = arith.addf %42, %44 : vector<8x64xf32>
    %46 = arith.mulf %40, %45 : vector<8x64xf32>
    %c0_27 = arith.constant 0 : index
    %c0_28 = arith.constant 0 : index
    %47 = vector.load %arg11[%c0_27, %c0_28] : memref<1x64xf32, #tpu.memory_space<vmem>>, vector<1x64xf32>
    %c0_29 = arith.constant 0 : index
    %c0_30 = arith.constant 0 : index
    %48 = vector.load %arg12[%c0_29, %c0_30] : memref<1x64xf32, #tpu.memory_space<vmem>>, vector<1x64xf32>
    %cst_31 = arith.constant dense<0.000000e+00> : vector<8xf32>
    %49 = vector.multi_reduction <add>, %46, %cst_31 [1] : vector<8x64xf32> to vector<8xf32>
    %50 = vector.shape_cast %49 : vector<8xf32> to vector<8x1xf32>
    %cst_32 = arith.constant 6.400000e+01 : f32
    %51 = vector.broadcast %cst_32 : f32 to vector<8x1xf32>
    %52 = arith.divf %50, %51 : vector<8x1xf32>
    %53 = vector.broadcast %52 : vector<8x1xf32> to vector<8x64xf32>
    %54 = arith.subf %46, %53 : vector<8x64xf32>
    %55 = arith.mulf %54, %54 : vector<8x64xf32>
    %cst_33 = arith.constant dense<0.000000e+00> : vector<8xf32>
    %56 = vector.multi_reduction <add>, %55, %cst_33 [1] : vector<8x64xf32> to vector<8xf32>
    %57 = vector.shape_cast %56 : vector<8xf32> to vector<8x1xf32>
    %cst_34 = arith.constant 6.400000e+01 : f32
    %58 = vector.broadcast %cst_34 : f32 to vector<8x1xf32>
    %59 = arith.divf %57, %58 : vector<8x1xf32>
    %cst_35 = arith.constant 9.99999997E-7 : f32
    %60 = vector.broadcast %cst_35 : f32 to vector<8x1xf32>
    %61 = arith.addf %59, %60 : vector<8x1xf32>
    %62 = math.rsqrt %61 : vector<8x1xf32>
    %63 = vector.broadcast %62 : vector<8x1xf32> to vector<8x64xf32>
    %64 = arith.mulf %54, %63 : vector<8x64xf32>
    %65 = vector.broadcast %47 : vector<1x64xf32> to vector<8x64xf32>
    %66 = arith.mulf %64, %65 : vector<8x64xf32>
    %67 = vector.broadcast %48 : vector<1x64xf32> to vector<8x64xf32>
    %68 = arith.addf %66, %67 : vector<8x64xf32>
    %c0_36 = arith.constant 0 : index
    %c0_37 = arith.constant 0 : index
    %69 = vector.load %arg13[%c0_36, %c0_37] : memref<64x32xf32, #tpu.memory_space<vmem>>, vector<64x32xf32>
    %cst_38 = arith.constant dense<0.000000e+00> : vector<8x32xf32>
    %70 = tpu.matmul %68, %69, %cst_38 {dimension_numbers = #tpu.dot_dimension_numbers<[1], [0], [0], [1], [0, 0, 1, 1], [], []>} : vector<8x64xf32>, vector<64x32xf32>, vector<8x32xf32> -> vector<8x32xf32>
    %71 = arith.addf %7, %70 : vector<8x32xf32>
    %c0_39 = arith.constant 0 : index
    %c0_40 = arith.constant 0 : index
    %72 = vector.load %arg14[%c0_39, %c0_40] : memref<1x32xf32, #tpu.memory_space<vmem>>, vector<1x32xf32>
    %73 = vector.broadcast %72 : vector<1x32xf32> to vector<8x32xf32>
    %74 = arith.addf %71, %73 : vector<8x32xf32>
    %c0_41 = arith.constant 0 : index
    %c0_42 = arith.constant 0 : index
    %75 = vector.load %arg15[%c0_41, %c0_42] : memref<8x32xf32, #tpu.memory_space<vmem>>, vector<8x32xf32>
    tpu.vector_store %arg15[%c0_41, %c0_42], %74 {strides = array<i32>} : memref<8x32xf32, #tpu.memory_space<vmem>>, vector<8x32xf32>,
    return
  }
  func.func @transform_0(%arg0: i32) -> (i32, i32) {
    %c0_i32 = arith.constant 0 : i32
    %c0_i32_0 = arith.constant 0 : i32
    return %arg0, %c0_i32 : i32, i32
  }
  func.func @transform_1(%arg0: i32) -> (i32, i32) {
    %c0_i32 = arith.constant 0 : i32
    %c0_i32_0 = arith.constant 0 : i32
    return %arg0, %c0_i32 : i32, i32
  }
  func.func @transform_2(%arg0: i32) -> (i32, i32) {
    %c0_i32 = arith.constant 0 : i32
    %c0_i32_0 = arith.constant 0 : i32
    %c0_i32_1 = arith.constant 0 : i32
    return %c0_i32, %c0_i32_0 : i32, i32
  }
  func.func @transform_3(%arg0: i32) -> (i32, i32) {
    %c0_i32 = arith.constant 0 : i32
    %c0_i32_0 = arith.constant 0 : i32
    %c0_i32_1 = arith.constant 0 : i32
    return %c0_i32, %c0_i32_0 : i32, i32
  }
  func.func @transform_4(%arg0: i32) -> (i32, i32) {
    %c0_i32 = arith.constant 0 : i32
    %c0_i32_0 = arith.constant 0 : i32
    %c0_i32_1 = arith.constant 0 : i32
    return %c0_i32, %c0_i32_0 : i32, i32
  }
  func.func @transform_5(%arg0: i32) -> (i32, i32) {
    %c0_i32 = arith.constant 0 : i32
    %c0_i32_0 = arith.constant 0 : i32
    %c0_i32_1 = arith.constant 0 : i32
    return %c0_i32, %c0_i32_0 : i32, i32
  }
  func.func @transform_6(%arg0: i32) -> (i32, i32) {
    %c0_i32 = arith.constant 0 : i32
    %c0_i32_0 = arith.constant 0 : i32
    %c0_i32_1 = arith.constant 0 : i32
    return %c0_i32, %c0_i32_0 : i32, i32
  }
  func.func @transform_7(%arg0: i32) -> (i32, i32) {
    %c0_i32 = arith.constant 0 : i32
    %c0_i32_0 = arith.constant 0 : i32
    %c0_i32_1 = arith.constant 0 : i32
    return %c0_i32, %c0_i32_0 : i32, i32
  }
  func.func @transform_8(%arg0: i32) -> (i32, i32) {
    %c0_i32 = arith.constant 0 : i32
    %c0_i32_0 = arith.constant 0 : i32
    %c0_i32_1 = arith.constant 0 : i32
    return %c0_i32, %c0_i32_0 : i32, i32
  }
  func.func @transform_9(%arg0: i32) -> (i32, i32) {
    %c0_i32 = arith.constant 0 : i32
    %c0_i32_0 = arith.constant 0 : i32
    %c0_i32_1 = arith.constant 0 : i32
    return %c0_i32, %c0_i32_0 : i32, i32
  }
  func.func @transform_10(%arg0: i32) -> (i32, i32) {
    %c0_i32 = arith.constant 0 : i32
    %c0_i32_0 = arith.constant 0 : i32
    %c0_i32_1 = arith.constant 0 : i32
    return %c0_i32, %c0_i32_0 : i32, i32
  }
  func.func @transform_11(%arg0: i32) -> (i32, i32) {
    %c0_i32 = arith.constant 0 : i32
    %c0_i32_0 = arith.constant 0 : i32
    %c0_i32_1 = arith.constant 0 : i32
    return %c0_i32, %c0_i32_0 : i32, i32
  }
  func.func @transform_12(%arg0: i32) -> (i32, i32) {
    %c0_i32 = arith.constant 0 : i32
    %c0_i32_0 = arith.constant 0 : i32
    %c0_i32_1 = arith.constant 0 : i32
    return %c0_i32, %c0_i32_0 : i32, i32
  }
  func.func @transform_13(%arg0: i32) -> (i32, i32) {
    %c0_i32 = arith.constant 0 : i32
    %c0_i32_0 = arith.constant 0 : i32
    %c0_i32_1 = arith.constant 0 : i32
    return %c0_i32, %c0_i32_0 : i32, i32
  }
  func.func @transform_14(%arg0: i32) -> (i32, i32) {
    %c0_i32 = arith.constant 0 : i32
    %c0_i32_0 = arith.constant 0 : i32
    return %arg0, %c0_i32 : i32, i32
  }
}

</mosaic_0001>

<llo_original>
// kernel: tpu_custom_call.1
$region0: #{tpu_custom_call.1}
  #allocation0 [shape = 'u32[]', space=smem, size = 0x4, offset = 0x4, fixed_abs, tag = 'smem constant byte address 0x4 - core index']
  #allocation1 [shape = 'u32[72,128]{1,0:T(1,128)}', space=vmem, size = 0x9000, scoped, tag = 'internal scratch']
  %s0 = inlined_call_operand.hbm [shape: f32[16,32], index: 0, kind: input, shape index: {}]
  %s1 = inlined_call_operand.hbm [shape: f32[16,32], index: 1, kind: input, shape index: {}]
  %s2 = inlined_call_operand.vmem [shape: f32[32,32], index: 2, kind: input, shape index: {}]
  %s3 = inlined_call_operand.vmem [shape: f32[1,32], index: 3, kind: input, shape index: {}]
  %s4 = inlined_call_operand.vmem [shape: f32[1,32], index: 4, kind: input, shape index: {}]
  %s5 = inlined_call_operand.vmem [shape: f32[1,32], index: 5, kind: input, shape index: {}]
  %s6 = inlined_call_operand.vmem [shape: f32[32,64], index: 6, kind: input, shape index: {}]
  %s7 = inlined_call_operand.vmem [shape: f32[1,64], index: 7, kind: input, shape index: {}]
  %s8 = inlined_call_operand.vmem [shape: f32[32,64], index: 8, kind: input, shape index: {}]
  %s9 = inlined_call_operand.vmem [shape: f32[1,64], index: 9, kind: input, shape index: {}]
  %s10 = inlined_call_operand.vmem [shape: f32[1,64], index: 10, kind: input, shape index: {}]
  %s11 = inlined_call_operand.vmem [shape: f32[1,64], index: 11, kind: input, shape index: {}]
  %s12 = inlined_call_operand.vmem [shape: f32[64,32], index: 12, kind: input, shape index: {}]
  %s13 = inlined_call_operand.vmem [shape: f32[1,32], index: 13, kind: input, shape index: {}]
  %s14 = inlined_call_operand.hbm [shape: f32[16,32], index: 14, kind: output, shape index: {}]
  %s15 = sld [smem:[#allocation0]]
  $region97: #{tpu_custom_call.1} parent=0
    _
  %s17 = ssub.s32 1, %s15
  %s18 = scalar_select 0, %s17, %s15
  $region1: #{tpu_custom_call.1} parent=0
    #allocation2 [shape = 'u8[8192]{0}', space=vmem, size = 0x2000, scoped, tag = 'input window, operand 0']
    #allocation3 [shape = 's32[2]{0}', space=sflag, size = 0x8, scoped, tag = 'scoped memory for tpu_custom_call.1']
    #allocation4 [shape = 's32[2]{0}', space=sflag, size = 0x8, scoped, tag = 'scoped memory for tpu_custom_call.1']
    #allocation5 [shape = 'u8[8192]{0}', space=vmem, size = 0x2000, scoped, tag = 'input window, operand 1']
    #allocation6 [shape = 's32[2]{0}', space=sflag, size = 0x8, scoped, tag = 'scoped memory for tpu_custom_call.1']
    #allocation7 [shape = 'u8[8192]{0}', space=vmem, size = 0x2000, scoped, tag = 'output window, operand 0']
    %19 = vsyncpa [#allocation3], 0
    %s20 = scalar_lea.sflag [#allocation3], 1
    %21 = vsyncpa %s20, 0
    %22 = vsyncpa [#allocation6], 0
    %s23 = scalar_lea.sflag [#allocation6], 1
    %24 = vsyncpa %s23, 0
    %25 = vsyncpa [#allocation4], 0
    %s26 = scalar_lea.sflag [#allocation4], 1
    %27 = vsyncpa %s26, 0
    loop: start=0, step=1, limit=4
    $region2: #{tpu_custom_call.1} parent=1 // loop_pre_header
      _
    $region3: #{tpu_custom_call.1} parent=1 // loop_header
      %s29 = sphi 0, %s33
      %p30 = scmp.ge.s32.totalorder %s29, 4
      %s39 = sphi 0, %s41
      %s42 = sphi 0, %s39
      %s43 = sphi 0, %s42
      %s59 = sphi 0, %s43
      %s65 = sphi 0, %s67
      %s68 = sphi 0, %s65
      %s69 = sphi 0, %s68
      %s85 = sphi 0, %s69
      %s89 = sphi 0, %s89
      %s91 = sphi 0, %s89
      %s92 = sphi 0, %s91
      %s106 = sphi 0, %s92
      %s110 = sphi 0, %s110
      %s112 = sphi 0, %s110
      %s113 = sphi 0, %s112
      %s127 = sphi 0, %s113
      %s131 = sphi 0, %s131
      %s133 = sphi 0, %s131
      %s134 = sphi 0, %s133
      %s148 = sphi 0, %s134
      %s152 = sphi 0, %s152
      %s154 = sphi 0, %s152
      %s155 = sphi 0, %s154
      %s169 = sphi 0, %s155
      %s173 = sphi 0, %s173
      %s175 = sphi 0, %s173
      %s176 = sphi 0, %s175
      %s190 = sphi 0, %s176
      %s194 = sphi 0, %s194
      %s196 = sphi 0, %s194
      %s197 = sphi 0, %s196
      %s211 = sphi 0, %s197
      %s215 = sphi 0, %s215
      %s217 = sphi 0, %s215
      %s218 = sphi 0, %s217
      %s232 = sphi 0, %s218
      %s236 = sphi 0, %s236
      %s238 = sphi 0, %s236
      %s239 = sphi 0, %s238
      %s253 = sphi 0, %s239
      %s257 = sphi 0, %s257
      %s259 = sphi 0, %s257
      %s260 = sphi 0, %s259
      %s274 = sphi 0, %s260
      %s278 = sphi 0, %s278
      %s280 = sphi 0, %s278
      %s281 = sphi 0, %s280
      %s295 = sphi 0, %s281
      %s299 = sphi 0, %s299
      %s301 = sphi 0, %s299
      %s302 = sphi 0, %s301
      %s316 = sphi 0, %s302
      %s320 = sphi 0, %s320
      %s322 = sphi 0, %s320
      %s323 = sphi 0, %s322
      %s337 = sphi 0, %s323
      %s343 = sphi 0, %s345
      %s346 = sphi 0, %s343
      %s347 = sphi 0, %s346
      %s363 = sphi 0, %s347
    $region4: #{tpu_custom_call.1} parent=1 // loop_header_branch
      %32 = sbr.rel (%p30) target = $region8
    $region5: #{tpu_custom_call.1} parent=1 // loop_body
      %s34 = ssub.s32 %s29, 1
      %s35 = ssub.s32 %s29, 2
      %s36 = sadd.s32 %s29, 1
      %s37 = ssub.s32 %s29, %s36
      %p38 = scmp.eq.s32.totalorder %s37, 0
      %s40 = sadd.s32 %s39, 1
      %s41 = scalar_select %p38, %s39, %s40
      %p44 = pneg %p38
      %p45 = scmp.eq.s32.totalorder %s29, 1
      %p46 = por %p44, %p45
      %p47 = scmp.ne.s32.totalorder %s39, %s42
      %p48 = scmp.eq.s32.totalorder %s29, 0
      %p49 = por %p47, %p48
      %p50 = scmp.ne.s32.totalorder %s39, %s42
      %p51 = scmp.eq.s32.totalorder %s34, 1
      %p52 = por %p50, %p51
      %p53 = scmp.ne.s32.totalorder %s42, %s43
      %p54 = scmp.eq.s32.totalorder %s34, 0
      %p55 = por %p53, %p54
      %p56 = scmp.ne.s32.totalorder %s42, %s43
      %p57 = scmp.eq.s32.totalorder %s35, 1
      %p58 = por %p56, %p57
      %p60 = scmp.ne.s32.totalorder %s43, %s59
      %p61 = scmp.eq.s32.totalorder %s35, 0
      %p62 = por %p60, %p61
      %s63 = ssub.s32 %s29, %s36
      %p64 = scmp.eq.s32.totalorder %s63, 0
      %s66 = sadd.s32 %s65, 1
      %s67 = scalar_select %p64, %s65, %s66
      %p70 = pneg %p64
      %p71 = scmp.eq.s32.totalorder %s29, 1
      %p72 = por %p70, %p71
      %p73 = scmp.ne.s32.totalorder %s65, %s68
      %p74 = scmp.eq.s32.totalorder %s29, 0
      %p75 = por %p73, %p74
      %p76 = scmp.ne.s32.totalorder %s65, %s68
      %p77 = scmp.eq.s32.totalorder %s34, 1
      %p78 = por %p76, %p77
      %p79 = scmp.ne.s32.totalorder %s68, %s69
      %p80 = scmp.eq.s32.totalorder %s34, 0
      %p81 = por %p79, %p80
      %p82 = scmp.ne.s32.totalorder %s68, %s69
      %p83 = scmp.eq.s32.totalorder %s35, 1
      %p84 = por %p82, %p83
      %p86 = scmp.ne.s32.totalorder %s69, %s85
      %p87 = scmp.eq.s32.totalorder %s35, 0
      %p88 = por %p86, %p87
      %s90 = sadd.s32 %s89, 1
      %p93 = scmp.eq.s32.totalorder %s29, 1
      %p94 = scmp.ne.s32.totalorder %s89, %s91
      %p95 = scmp.eq.s32.totalorder %s29, 0
      %p96 = por %p94, %p95
      %p97 = scmp.ne.s32.totalorder %s89, %s91
      %p98 = scmp.eq.s32.totalorder %s34, 1
      %p99 = por %p97, %p98
      %p100 = scmp.ne.s32.totalorder %s91, %s92
      %p101 = scmp.eq.s32.totalorder %s34, 0
      %p102 = por %p100, %p101
      %p103 = scmp.ne.s32.totalorder %s91, %s92
      %p104 = scmp.eq.s32.totalorder %s35, 1
      %p105 = por %p103, %p104
      %p107 = scmp.ne.s32.totalorder %s92, %s106
      %p108 = scmp.eq.s32.totalorder %s35, 0
      %p109 = por %p107, %p108
      %s111 = sadd.s32 %s110, 1
      %p114 = scmp.eq.s32.totalorder %s29, 1
      %p115 = scmp.ne.s32.totalorder %s110, %s112
      %p116 = scmp.eq.s32.totalorder %s29, 0
      %p117 = por %p115, %p116
      %p118 = scmp.ne.s32.totalorder %s110, %s112
      %p119 = scmp.eq.s32.totalorder %s34, 1
      %p120 = por %p118, %p119
      %p121 = scmp.ne.s32.totalorder %s112, %s113
      %p122 = scmp.eq.s32.totalorder %s34, 0
      %p123 = por %p121, %p122
      %p124 = scmp.ne.s32.totalorder %s112, %s113
      %p125 = scmp.eq.s32.totalorder %s35, 1
      %p126 = por %p124, %p125
      %p128 = scmp.ne.s32.totalorder %s113, %s127
      %p129 = scmp.eq.s32.totalorder %s35, 0
      %p130 = por %p128, %p129
      %s132 = sadd.s32 %s131, 1
      %p135 = scmp.eq.s32.totalorder %s29, 1
      %p136 = scmp.ne.s32.totalorder %s131, %s133
      %p137 = scmp.eq.s32.totalorder %s29, 0
      %p138 = por %p136, %p137
      %p139 = scmp.ne.s32.totalorder %s131, %s133
      %p140 = scmp.eq.s32.totalorder %s34, 1
      %p141 = por %p139, %p140
      %p142 = scmp.ne.s32.totalorder %s133, %s134
      %p143 = scmp.eq.s32.totalorder %s34, 0
      %p144 = por %p142, %p143
      %p145 = scmp.ne.s32.totalorder %s133, %s134
      %p146 = scmp.eq.s32.totalorder %s35, 1
      %p147 = por %p145, %p146
      %p149 = scmp.ne.s32.totalorder %s134, %s148
      %p150 = scmp.eq.s32.totalorder %s35, 0
      %p151 = por %p149, %p150
      %s153 = sadd.s32 %s152, 1
      %p156 = scmp.eq.s32.totalorder %s29, 1
      %p157 = scmp.ne.s32.totalorder %s152, %s154
      %p158 = scmp.eq.s32.totalorder %s29, 0
      %p159 = por %p157, %p158
      %p160 = scmp.ne.s32.totalorder %s152, %s154
      %p161 = scmp.eq.s32.totalorder %s34, 1
      %p162 = por %p160, %p161
      %p163 = scmp.ne.s32.totalorder %s154, %s155
      %p164 = scmp.eq.s32.totalorder %s34, 0
      %p165 = por %p163, %p164
      %p166 = scmp.ne.s32.totalorder %s154, %s155
      %p167 = scmp.eq.s32.totalorder %s35, 1
      %p168 = por %p166, %p167
      %p170 = scmp.ne.s32.totalorder %s155, %s169
      %p171 = scmp.eq.s32.totalorder %s35, 0
      %p172 = por %p170, %p171
      %s174 = sadd.s32 %s173, 1
      %p177 = scmp.eq.s32.totalorder %s29, 1
      %p178 = scmp.ne.s32.totalorder %s173, %s175
      %p179 = scmp.eq.s32.totalorder %s29, 0
      %p180 = por %p178, %p179
      %p181 = scmp.ne.s32.totalorder %s173, %s175
      %p182 = scmp.eq.s32.totalorder %s34, 1
      %p183 = por %p181, %p182
      %p184 = scmp.ne.s32.totalorder %s175, %s176
      %p185 = scmp.eq.s32.totalorder %s34, 0
      %p186 = por %p184, %p185
      %p187 = scmp.ne.s32.totalorder %s175, %s176
      %p188 = scmp.eq.s32.totalorder %s35, 1
      %p189 = por %p187, %p188
      %p191 = scmp.ne.s32.totalorder %s176, %s190
      %p192 = scmp.eq.s32.totalorder %s35, 0
      %p193 = por %p191, %p192
      %s195 = sadd.s32 %s194, 1
      %p198 = scmp.eq.s32.totalorder %s29, 1
      %p199 = scmp.ne.s32.totalorder %s194, %s196
      %p200 = scmp.eq.s32.totalorder %s29, 0
      %p201 = por %p199, %p200
      %p202 = scmp.ne.s32.totalorder %s194, %s196
      %p203 = scmp.eq.s32.totalorder %s34, 1
      %p204 = por %p202, %p203
      %p205 = scmp.ne.s32.totalorder %s196, %s197
      %p206 = scmp.eq.s32.totalorder %s34, 0
      %p207 = por %p205, %p206
      %p208 = scmp.ne.s32.totalorder %s196, %s197
      %p209 = scmp.eq.s32.totalorder %s35, 1
      %p210 = por %p208, %p209
      %p212 = scmp.ne.s32.totalorder %s197, %s211
      %p213 = scmp.eq.s32.totalorder %s35, 0
      %p214 = por %p212, %p213
      %s216 = sadd.s32 %s215, 1
      %p219 = scmp.eq.s32.totalorder %s29, 1
      %p220 = scmp.ne.s32.totalorder %s215, %s217
      %p221 = scmp.eq.s32.totalorder %s29, 0
      %p222 = por %p220, %p221
      %p223 = scmp.ne.s32.totalorder %s215, %s217
      %p224 = scmp.eq.s32.totalorder %s34, 1
      %p225 = por %p223, %p224
      %p226 = scmp.ne.s32.totalorder %s217, %s218
      %p227 = scmp.eq.s32.totalorder %s34, 0
      %p228 = por %p226, %p227
      %p229 = scmp.ne.s32.totalorder %s217, %s218
      %p230 = scmp.eq.s32.totalorder %s35, 1
      %p231 = por %p229, %p230
      %p233 = scmp.ne.s32.totalorder %s218, %s232
      %p234 = scmp.eq.s32.totalorder %s35, 0
      %p235 = por %p233, %p234
      %s237 = sadd.s32 %s236, 1
      %p240 = scmp.eq.s32.totalorder %s29, 1
      %p241 = scmp.ne.s32.totalorder %s236, %s238
      %p242 = scmp.eq.s32.totalorder %s29, 0
      %p243 = por %p241, %p242
      %p244 = scmp.ne.s32.totalorder %s236, %s238
      %p245 = scmp.eq.s32.totalorder %s34, 1
      %p246 = por %p244, %p245
      %p247 = scmp.ne.s32.totalorder %s238, %s239
      %p248 = scmp.eq.s32.totalorder %s34, 0
      %p249 = por %p247, %p248
      %p250 = scmp.ne.s32.totalorder %s238, %s239
      %p251 = scmp.eq.s32.totalorder %s35, 1
      %p252 = por %p250, %p251
      %p254 = scmp.ne.s32.totalorder %s239, %s253
      %p255 = scmp.eq.s32.totalorder %s35, 0
      %p256 = por %p254, %p255
      %s258 = sadd.s32 %s257, 1
      %p261 = scmp.eq.s32.totalorder %s29, 1
      %p262 = scmp.ne.s32.totalorder %s257, %s259
      %p263 = scmp.eq.s32.totalorder %s29, 0
      %p264 = por %p262, %p263
      %p265 = scmp.ne.s32.totalorder %s257, %s259
      %p266 = scmp.eq.s32.totalorder %s34, 1
      %p267 = por %p265, %p266
      %p268 = scmp.ne.s32.totalorder %s259, %s260
      %p269 = scmp.eq.s32.totalorder %s34, 0
      %p270 = por %p268, %p269
      %p271 = scmp.ne.s32.totalorder %s259, %s260
      %p272 = scmp.eq.s32.totalorder %s35, 1
      %p273 = por %p271, %p272
      %p275 = scmp.ne.s32.totalorder %s260, %s274
      %p276 = scmp.eq.s32.totalorder %s35, 0
      %p277 = por %p275, %p276
      %s279 = sadd.s32 %s278, 1
      %p282 = scmp.eq.s32.totalorder %s29, 1
      %p283 = scmp.ne.s32.totalorder %s278, %s280
      %p284 = scmp.eq.s32.totalorder %s29, 0
      %p285 = por %p283, %p284
      %p286 = scmp.ne.s32.totalorder %s278, %s280
      %p287 = scmp.eq.s32.totalorder %s34, 1
      %p288 = por %p286, %p287
      %p289 = scmp.ne.s32.totalorder %s280, %s281
      %p290 = scmp.eq.s32.totalorder %s34, 0
      %p291 = por %p289, %p290
      %p292 = scmp.ne.s32.totalorder %s280, %s281
      %p293 = scmp.eq.s32.totalorder %s35, 1
      %p294 = por %p292, %p293
      %p296 = scmp.ne.s32.totalorder %s281, %s295
      %p297 = scmp.eq.s32.totalorder %s35, 0
      %p298 = por %p296, %p297
      %s300 = sadd.s32 %s299, 1
      %p303 = scmp.eq.s32.totalorder %s29, 1
      %p304 = scmp.ne.s32.totalorder %s299, %s301
      %p305 = scmp.eq.s32.totalorder %s29, 0
      %p306 = por %p304, %p305
      %p307 = scmp.ne.s32.totalorder %s299, %s301
      %p308 = scmp.eq.s32.totalorder %s34, 1
      %p309 = por %p307, %p308
      %p310 = scmp.ne.s32.totalorder %s301, %s302
      %p311 = scmp.eq.s32.totalorder %s34, 0
      %p312 = por %p310, %p311
      %p313 = scmp.ne.s32.totalorder %s301, %s302
      %p314 = scmp.eq.s32.totalorder %s35, 1
      %p315 = por %p313, %p314
      %p317 = scmp.ne.s32.totalorder %s302, %s316
      %p318 = scmp.eq.s32.totalorder %s35, 0
      %p319 = por %p317, %p318
      %s321 = sadd.s32 %s320, 1
      %p324 = scmp.eq.s32.totalorder %s29, 1
      %p325 = scmp.ne.s32.totalorder %s320, %s322
      %p326 = scmp.eq.s32.totalorder %s29, 0
      %p327 = por %p325, %p326
      %p328 = scmp.ne.s32.totalorder %s320, %s322
      %p329 = scmp.eq.s32.totalorder %s34, 1
      %p330 = por %p328, %p329
      %p331 = scmp.ne.s32.totalorder %s322, %s323
      %p332 = scmp.eq.s32.totalorder %s34, 0
      %p333 = por %p331, %p332
      %p334 = scmp.ne.s32.totalorder %s322, %s323
      %p335 = scmp.eq.s32.totalorder %s35, 1
      %p336 = por %p334, %p335
      %p338 = scmp.ne.s32.totalorder %s323, %s337
      %p339 = scmp.eq.s32.totalorder %s35, 0
      %p340 = por %p338, %p339
      %s341 = ssub.s32 %s29, %s36
      %p342 = scmp.eq.s32.totalorder %s341, 0
      %s344 = sadd.s32 %s343, 1
      %s345 = scalar_select %p342, %s343, %s344
      %p348 = pneg %p342
      %p349 = scmp.eq.s32.totalorder %s29, 1
      %p350 = por %p348, %p349
      %p351 = scmp.ne.s32.totalorder %s343, %s346
      %p352 = scmp.eq.s32.totalorder %s29, 0
      %p353 = por %p351, %p352
      %p354 = scmp.ne.s32.totalorder %s343, %s346
      %p355 = scmp.eq.s32.totalorder %s34, 1
      %p356 = por %p354, %p355
      %p357 = scmp.ne.s32.totalorder %s346, %s347
      %p358 = scmp.eq.s32.totalorder %s34, 0
      %p359 = por %p357, %p358
      %p360 = scmp.ne.s32.totalorder %s346, %s347
      %p361 = scmp.eq.s32.totalorder %s35, 1
      %p362 = por %p360, %p361
      %p364 = scmp.ne.s32.totalorder %s347, %s363
      %p365 = scmp.eq.s32.totalorder %s35, 0
      %p366 = por %p364, %p365
      %p367 = scmp.le.s32.totalorder 1, %s29
      %p368 = scmp.lt.s32.totalorder %s29, 3
      %p369 = pnand %p367, %p368
      %p370 = pneg %p369
      // Predicated region
      $region9: #{tpu_custom_call.1} parent=5 // pred_check
        _
      $region10: #{tpu_custom_call.1} parent=5 // pred_check_branch
        %372 = sbr.rel (%p369) target = $region12
      $region11: #{tpu_custom_call.1} parent=5 // pred_region
        %s373 = ssub.s32 %s29, 1
        // Predicated region
        $region13: #{tpu_custom_call.1} parent=11 // pred_check
          %p374 = pneg %p102
        $region14: #{tpu_custom_call.1} parent=11 // pred_check_branch
          %376 = sbr.rel (%p374) target = $region16
        $region15: #{tpu_custom_call.1} parent=11 // pred_region
          _
        $region16: #{tpu_custom_call.1} parent=11 // pred_fallthru
          _
        // Predicated region
        $region17: #{tpu_custom_call.1} parent=11 // pred_check
          %p377 = pneg %p123
        $region18: #{tpu_custom_call.1} parent=11 // pred_check_branch
          %379 = sbr.rel (%p377) target = $region20
        $region19: #{tpu_custom_call.1} parent=11 // pred_region
          _
        $region20: #{tpu_custom_call.1} parent=11 // pred_fallthru
          _
        // Predicated region
        $region21: #{tpu_custom_call.1} parent=11 // pred_check
          %p380 = pneg %p144
        $region22: #{tpu_custom_call.1} parent=11 // pred_check_branch
          %382 = sbr.rel (%p380) target = $region24
        $region23: #{tpu_custom_call.1} parent=11 // pred_region
          _
        $region24: #{tpu_custom_call.1} parent=11 // pred_fallthru
          _
        // Predicated region
        $region25: #{tpu_custom_call.1} parent=11 // pred_check
          %p383 = pneg %p165
        $region26: #{tpu_custom_call.1} parent=11 // pred_check_branch
          %385 = sbr.rel (%p383) target = $region28
        $region27: #{tpu_custom_call.1} parent=11 // pred_region
          _
        $region28: #{tpu_custom_call.1} parent=11 // pred_fallthru
          _
        // Predicated region
        $region29: #{tpu_custom_call.1} parent=11 // pred_check
          %p386 = pneg %p186
        $region30: #{tpu_custom_call.1} parent=11 // pred_check_branch
          %388 = sbr.rel (%p386) target = $region32
        $region31: #{tpu_custom_call.1} parent=11 // pred_region
          _
        $region32: #{tpu_custom_call.1} parent=11 // pred_fallthru
          _
        // Predicated region
        $region33: #{tpu_custom_call.1} parent=11 // pred_check
          %p389 = pneg %p207
        $region34: #{tpu_custom_call.1} parent=11 // pred_check_branch
          %391 = sbr.rel (%p389) target = $region36
        $region35: #{tpu_custom_call.1} parent=11 // pred_region
          _
        $region36: #{tpu_custom_call.1} parent=11 // pred_fallthru
          _
        // Predicated region
        $region37: #{tpu_custom_call.1} parent=11 // pred_check
          %p392 = pneg %p228
        $region38: #{tpu_custom_call.1} parent=11 // pred_check_branch
          %394 = sbr.rel (%p392) target = $region40
        $region39: #{tpu_custom_call.1} parent=11 // pred_region
          _
        $region40: #{tpu_custom_call.1} parent=11 // pred_fallthru
          _
        // Predicated region
        $region41: #{tpu_custom_call.1} parent=11 // pred_check
          %p395 = pneg %p249
        $region42: #{tpu_custom_call.1} parent=11 // pred_check_branch
          %397 = sbr.rel (%p395) target = $region44
        $region43: #{tpu_custom_call.1} parent=11 // pred_region
          _
        $region44: #{tpu_custom_call.1} parent=11 // pred_fallthru
          _
        // Predicated region
        $region45: #{tpu_custom_call.1} parent=11 // pred_check
          %p398 = pneg %p270
        $region46: #{tpu_custom_call.1} parent=11 // pred_check_branch
          %400 = sbr.rel (%p398) target = $region48
        $region47: #{tpu_custom_call.1} parent=11 // pred_region
          _
        $region48: #{tpu_custom_call.1} parent=11 // pred_fallthru
          _
        // Predicated region
        $region49: #{tpu_custom_call.1} parent=11 // pred_check
          %p401 = pneg %p291
        $region50: #{tpu_custom_call.1} parent=11 // pred_check_branch
          %403 = sbr.rel (%p401) target = $region52
        $region51: #{tpu_custom_call.1} parent=11 // pred_region
          _
        $region52: #{tpu_custom_call.1} parent=11 // pred_fallthru
          _
        // Predicated region
        $region53: #{tpu_custom_call.1} parent=11 // pred_check
          %p404 = pneg %p312
        $region54: #{tpu_custom_call.1} parent=11 // pred_check_branch
          %406 = sbr.rel (%p404) target = $region56
        $region55: #{tpu_custom_call.1} parent=11 // pred_region
          _
        $region56: #{tpu_custom_call.1} parent=11 // pred_fallthru
          _
        // Predicated region
        $region57: #{tpu_custom_call.1} parent=11 // pred_check
          %p407 = pneg %p333
        $region58: #{tpu_custom_call.1} parent=11 // pred_check_branch
          %409 = sbr.rel (%p407) target = $region60
        $region59: #{tpu_custom_call.1} parent=11 // pred_region
          _
        $region60: #{tpu_custom_call.1} parent=11 // pred_fallthru
          _
      $region12: #{tpu_custom_call.1} parent=5 // pred_fallthru
        _
      %p410 = scmp.lt.s32.totalorder %s29, 2
      // Predicated region
      $region61: #{tpu_custom_call.1} parent=5 // pred_check
        %p411 = pneg %p410
      $region62: #{tpu_custom_call.1} parent=5 // pred_check_branch
        %413 = sbr.rel (%p411) target = $region64
      $region63: #{tpu_custom_call.1} parent=5 // pred_region
        // Predicated region
        $region65: #{tpu_custom_call.1} parent=63 // pred_check
          %p414 = pneg %p49
        $region66: #{tpu_custom_call.1} parent=63 // pred_check_branch
          %416 = sbr.rel (%p414) target = $region68
        $region67: #{tpu_custom_call.1} parent=63 // pred_region
          %s417 = sand.u32 %s39, 1
          %s418 = scalar_lea.sflag [#allocation3], %s417
          %s419 = sand.u32 %s39, 1
          %s420 = smul.addr %s419, 8
          %s421 = scalar_lea.vmem [#allocation2], %s420
          %423 = vsyncadd %s418, 0
          %s424 = smul.addr %s29, 8
          %s425 = scalar_lea.hbm %s0, %s424
          %s427 = sshll.u32 %s425, 4
          %s428 = int_to_ptr.hbm [resolvable:$true] %s427
          %s429 = sshll.u32 %s421, 4
          %s430 = int_to_ptr.vmem [resolvable:$true] %s429
          %432 = dma.hbm_to_vmem [thread:$0]  %s428, 128, %s430, %s418
        $region68: #{tpu_custom_call.1} parent=63 // pred_fallthru
          _
        // Predicated region
        $region69: #{tpu_custom_call.1} parent=63 // pred_check
          %p433 = pneg %p75
        $region70: #{tpu_custom_call.1} parent=63 // pred_check_branch
          %435 = sbr.rel (%p433) target = $region72
        $region71: #{tpu_custom_call.1} parent=63 // pred_region
          %s436 = sand.u32 %s65, 1
          %s437 = scalar_lea.sflag [#allocation6], %s436
          %s438 = sand.u32 %s65, 1
          %s439 = smul.addr %s438, 8
          %s440 = scalar_lea.vmem [#allocation5], %s439
          %442 = vsyncadd %s437, 0
          %s443 = smul.addr %s29, 8
          %s444 = scalar_lea.hbm %s1, %s443
          %s446 = sshll.u32 %s444, 4
          %s447 = int_to_ptr.hbm [resolvable:$true] %s446
          %s448 = sshll.u32 %s440, 4
          %s449 = int_to_ptr.vmem [resolvable:$true] %s448
          %451 = dma.hbm_to_vmem [thread:$0]  %s447, 128, %s449, %s437
        $region72: #{tpu_custom_call.1} parent=63 // pred_fallthru
          _
      $region64: #{tpu_custom_call.1} parent=5 // pred_fallthru
        _
      %p452 = scmp.le.s32.totalorder 1, %s29
      %p453 = scmp.lt.s32.totalorder %s29, 3
      %p454 = pnand %p452, %p453
      %p455 = pneg %p454
      // Predicated region
      $region73: #{tpu_custom_call.1} parent=5 // pred_check
        _
      $region74: #{tpu_custom_call.1} parent=5 // pred_check_branch
        %457 = sbr.rel (%p454) target = $region76
      $region75: #{tpu_custom_call.1} parent=5 // pred_region
        %s458 = ssub.s32 %s29, 1
        %s459 = sand.u32 %s42, 1
        %s460 = scalar_lea.sflag [#allocation3], %s459
        %s461 = sand.u32 %s42, 1
        %s462 = smul.addr %s461, 8
        %s463 = scalar_lea.vmem [#allocation2], %s462
        // Predicated region
        $region77: #{tpu_custom_call.1} parent=75 // pred_check
          %p464 = pneg %p55
        $region78: #{tpu_custom_call.1} parent=75 // pred_check_branch
          %466 = sbr.rel (%p464) target = $region80
        $region79: #{tpu_custom_call.1} parent=75 // pred_region
          %468 = dma.done %s460, 128
        $region80: #{tpu_custom_call.1} parent=75 // pred_fallthru
          _
        %s469 = sand.u32 %s68, 1
        %s470 = scalar_lea.sflag [#allocation6], %s469
        %s471 = sand.u32 %s68, 1
        %s472 = smul.addr %s471, 8
        %s473 = scalar_lea.vmem [#allocation5], %s472
        // Predicated region
        $region81: #{tpu_custom_call.1} parent=75 // pred_check
          %p474 = pneg %p81
        $region82: #{tpu_custom_call.1} parent=75 // pred_check_branch
          %476 = sbr.rel (%p474) target = $region84
        $region83: #{tpu_custom_call.1} parent=75 // pred_region
          %478 = dma.done %s470, 128
        $region84: #{tpu_custom_call.1} parent=75 // pred_fallthru
          _
        %s479 = sand.u32 %s42, 1
        %s480 = scalar_lea.sflag [#allocation3], %s479
        %s481 = sand.u32 %s42, 1
        %s482 = smul.addr %s481, 8
        %s483 = scalar_lea.vmem [#allocation2], %s482
        %p484 = pneg %p55
        %p485 = pneg %p52
        %s486 = sand.u32 %s68, 1
        %s487 = scalar_lea.sflag [#allocation6], %s486
        %s488 = sand.u32 %s68, 1
        %s489 = smul.addr %s488, 8
        %s490 = scalar_lea.vmem [#allocation5], %s489
        %p491 = pneg %p81
        %p492 = pneg %p78
        %p493 = pneg %p102
        %p494 = pneg %p99
        %p495 = pneg %p123
        %p496 = pneg %p120
        %p497 = pneg %p144
        %p498 = pneg %p141
        %p499 = pneg %p165
        %p500 = pneg %p162
        %p501 = pneg %p186
        %p502 = pneg %p183
        %p503 = pneg %p207
        %p504 = pneg %p204
        %p505 = pneg %p228
        %p506 = pneg %p225
        %p507 = pneg %p249
        %p508 = pneg %p246
        %p509 = pneg %p270
        %p510 = pneg %p267
        %p511 = pneg %p291
        %p512 = pneg %p288
        %p513 = pneg %p312
        %p514 = pneg %p309
        %p515 = pneg %p333
        %p516 = pneg %p330
        %p517 = pneg %p359
        %p518 = pneg %p356
        %s519 = sand.u32 %s346, 1
        %s520 = scalar_lea.sflag [#allocation4], %s519
        %s521 = sand.u32 %s346, 1
        %s522 = smul.addr %s521, 8
        %s523 = scalar_lea.vmem [#allocation7], %s522
        %v524 = vld [vmem:[%s473] sm:$0xff]
        %v525 = vld [vmem:[%s463] sm:$0xff]
        %v526 = vld [vmem:[%s2] sm:$0xff]
        %v527 = vld [vmem:[%s2 + $0x8] sm:$0xff]
        %v528 = vld [vmem:[%s2 + $0x10] sm:$0xff]
        %v529 = vld [vmem:[%s2 + $0x18] sm:$0xff]
        %vm530 = vcmask 261120
        %v532 = vsel %vm530, %v525, 0
        %534 = vmatpush.msra.mxu0 0.0
        %535 = vmatpush.msra.mxu0 0.0
        %536 = vmatpush.msra.mxu0 0.0
        %537 = vmatpush.msra.mxu0 0.0
        %538 = vmatpush.msra.mxu0 0.0
        %539 = vmatpush.msra.mxu0 0.0
        %540 = vmatpush.msra.mxu0 0.0
        %541 = vmatpush.msra.mxu0 0.0
        %542 = vmatpush.msra.mxu0 0.0
        %543 = vmatpush.msra.mxu0 0.0
        %544 = vmatpush.msra.mxu0 0.0
        %545 = vmatpush.msra.mxu0 0.0
        %546 = vmatpush.msra.mxu0 %v529
        %547 = vmatpush.msra.mxu0 %v528
        %548 = vmatpush.msra.mxu0 %v527
        %549 = vmatpush.msra.mxu0 %v526
        %550 = vmatmul.f32.gmra.mxu0 %v532
        %v551 = vpop.f32.mrf.mxu0
        %v552 = vadd.f32 0.0, %v551
        %553 = vdwg.mxu0
        %v554 = vadd.f32 %v524, %v552
        %v555 = vld [vmem:[%s3] sm:$0x1]
        %v557 = vperm.slane %v555, 0
        %v559 = vadd.f32 %v554, %v557
        %v560 = vld [vmem:[%s4] sm:$0x1]
        %v561 = vld [vmem:[%s5] sm:$0x1]
        %v562 = vsel %vm530, %v559, 0.0
        %563 = vadd.xlane.f32.xlu0 %v562
        %v564 = vpop.xlane.xlu0 %563
        %v565 = vrcp.pop 32.0
        %v566 = vmul.f32 32.0, %v565
        %v567 = vsub.f32 1.0, %v566
        %v568 = vmul.f32 %v565, %v567
        %v569 = vadd.f32 %v565, %v568
        %vm570 = vweird.f32 %v565
        %v571 = vsel %vm570, %v565, %v569
        %v572 = vmul.f32 %v564, %v571
        %v573 = vsub.f32 %v559, %v572
        %v574 = vmul.f32 %v573, %v573
        %v575 = vsel %vm530, %v574, 0.0
        %576 = vadd.xlane.f32.xlu0 %v575
        %v577 = vpop.xlane.xlu0 %576
        %v578 = vmul.f32 %v577, %v571
        %v579 = vadd.f32 %v578, 1e-05
        %v580 = vrsqrt.pop %v579
        %v581 = vmul.f32 %v580, %v579
        %v582 = vmul.f32 %v581, %v580
        %v583 = vmul.f32 0.5, %v582
        %v584 = vsub.f32 1.5, %v583
        %v585 = vmul.f32 %v580, %v584
        %vm586 = vweird.f32 %v579
        %vm587 = vweird.f32 %v580
        %vm588 = vmor %vm586, %vm587
        %v589 = vsel %vm588, %v580, %v585
        %v590 = vmul.f32 %v573, %v589
        %v592 = vperm.slane %v560, 0
        %v594 = vmul.f32 %v590, %v592
        %v596 = vperm.slane %v561, 0
        %v598 = vadd.f32 %v594, %v596
        %v599 = vld [vmem:[%s6] sm:$0xff]
        %v600 = vld [vmem:[%s6 + $0x8] sm:$0xff]
        %v601 = vld [vmem:[%s6 + $0x10] sm:$0xff]
        %v602 = vld [vmem:[%s6 + $0x18] sm:$0xff]
        %v603 = vld [vmem:[%s7] sm:$0x1]
        %v605 = vperm.slane %v603, 0
        %v608 = vsel %vm530, %v598, 0
        %610 = vmatpush.msra.mxu0 0.0
        %611 = vmatpush.msra.mxu0 0.0
        %612 = vmatpush.msra.mxu0 0.0
        %613 = vmatpush.msra.mxu0 0.0
        %614 = vmatpush.msra.mxu0 0.0
        %615 = vmatpush.msra.mxu0 0.0
        %616 = vmatpush.msra.mxu0 0.0
        %617 = vmatpush.msra.mxu0 0.0
        %618 = vmatpush.msra.mxu0 0.0
        %619 = vmatpush.msra.mxu0 0.0
        %620 = vmatpush.msra.mxu0 0.0
        %621 = vmatpush.msra.mxu0 0.0
        %622 = vmatpush.msra.mxu0 %v602
        %623 = vmatpush.msra.mxu0 %v601
        %624 = vmatpush.msra.mxu0 %v600
        %625 = vmatpush.msra.mxu0 %v599
        %626 = vmatmul.f32.gmra.mxu0 %v608
        %v627 = vpop.f32.mrf.mxu0
        %v628 = vadd.f32 %v605, %v627
        %629 = vdwg.mxu0
        %v630 = vxor.u32 %v628, 2147483648
        %v631 = vmul.f32 %v630, 1.442695
        %v632 = vpow.pop %v631
        %v633 = vadd.f32 %v632, 1.0
        %v634 = vrcp.pop %v633
        %v635 = vmul.f32 %v633, %v634
        %v636 = vsub.f32 1.0, %v635
        %v637 = vmul.f32 %v634, %v636
        %v638 = vadd.f32 %v634, %v637
        %vm639 = vweird.f32 %v633
        %vm640 = vweird.f32 %v634
        %vm641 = vmor %vm639, %vm640
        %v642 = vsel %vm641, %v634, %v638
        %v643 = vand.u32 2147483647, %v633
        %vm644 = vcmp.eq.f32.partialorder %v643, 8.507059e+37
        %v645 = vand.u32 %v633, 2147483648
        %v646 = vor.u32 1.1754944e-38, %v645
        %v647 = vsel %vm644, %v646, %v642
        %v648 = vmul.f32 1.0, %v647
        %v649 = vmul.f32 %v628, %v648
        %v650 = vld [vmem:[%s8] sm:$0xff]
        %v651 = vld [vmem:[%s8 + $0x8] sm:$0xff]
        %v652 = vld [vmem:[%s8 + $0x10] sm:$0xff]
        %v653 = vld [vmem:[%s8 + $0x18] sm:$0xff]
        %v654 = vld [vmem:[%s9] sm:$0x1]
        %v656 = vperm.slane %v654, 0
        %658 = vmatpush.msra.mxu0 0.0
        %659 = vmatpush.msra.mxu0 0.0
        %660 = vmatpush.msra.mxu0 0.0
        %661 = vmatpush.msra.mxu0 0.0
        %662 = vmatpush.msra.mxu0 0.0
        %663 = vmatpush.msra.mxu0 0.0
        %664 = vmatpush.msra.mxu0 0.0
        %665 = vmatpush.msra.mxu0 0.0
        %666 = vmatpush.msra.mxu0 0.0
        %667 = vmatpush.msra.mxu0 0.0
        %668 = vmatpush.msra.mxu0 0.0
        %669 = vmatpush.msra.mxu0 0.0
        %670 = vmatpush.msra.mxu0 %v653
        %671 = vmatpush.msra.mxu0 %v652
        %672 = vmatpush.msra.mxu0 %v651
        %673 = vmatpush.msra.mxu0 %v650
        %674 = vmatmul.f32.gmra.mxu0 %v608
        %v675 = vpop.f32.mrf.mxu0
        %v676 = vadd.f32 %v656, %v675
        %677 = vdwg.mxu0
        %v678 = vmul.f32 %v649, %v676
        %v679 = vld [vmem:[%s10] sm:$0x1]
        %v680 = vld [vmem:[%s11] sm:$0x1]
        %vm681 = vcmask 523264
        %v682 = vsel %vm681, %v678, 0.0
        %683 = vadd.xlane.f32.xlu0 %v682
        %v684 = vpop.xlane.xlu0 %683
        %v685 = vrcp.pop 64.0
        %v686 = vmul.f32 64.0, %v685
        %v687 = vsub.f32 1.0, %v686
        %v688 = vmul.f32 %v685, %v687
        %v689 = vadd.f32 %v685, %v688
        %vm690 = vweird.f32 %v685
        %v691 = vsel %vm690, %v685, %v689
        %v692 = vmul.f32 %v684, %v691
        %v693 = vsub.f32 %v678, %v692
        %v694 = vmul.f32 %v693, %v693
        %v695 = vsel %vm681, %v694, 0.0
        %696 = vadd.xlane.f32.xlu0 %v695
        %v697 = vpop.xlane.xlu0 %696
        %v698 = vmul.f32 %v697, %v691
        %v699 = vadd.f32 %v698, 1e-06
        %v700 = vrsqrt.pop %v699
        %v701 = vmul.f32 %v700, %v699
        %v702 = vmul.f32 %v701, %v700
        %v703 = vmul.f32 0.5, %v702
        %v704 = vsub.f32 1.5, %v703
        %v705 = vmul.f32 %v700, %v704
        %vm706 = vweird.f32 %v699
        %vm707 = vweird.f32 %v700
        %vm708 = vmor %vm706, %vm707
        %v709 = vsel %vm708, %v700, %v705
        %v710 = vmul.f32 %v693, %v709
        %v712 = vperm.slane %v679, 0
        %v714 = vmul.f32 %v710, %v712
        %v716 = vperm.slane %v680, 0
        %v718 = vadd.f32 %v714, %v716
        %v719 = vld [vmem:[%s12] sm:$0xff]
        %v720 = vld [vmem:[%s12 + $0x8] sm:$0xff]
        %v721 = vld [vmem:[%s12 + $0x10] sm:$0xff]
        %v722 = vld [vmem:[%s12 + $0x18] sm:$0xff]
        %v723 = vld [vmem:[%s12 + $0x20] sm:$0xff]
        %v724 = vld [vmem:[%s12 + $0x28] sm:$0xff]
        %v725 = vld [vmem:[%s12 + $0x30] sm:$0xff]
        %v726 = vld [vmem:[%s12 + $0x38] sm:$0xff]
        %v728 = vsel %vm681, %v718, 0
        %730 = vmatpush.msra.mxu0 0.0
        %731 = vmatpush.msra.mxu0 0.0
        %732 = vmatpush.msra.mxu0 0.0
        %733 = vmatpush.msra.mxu0 0.0
        %734 = vmatpush.msra.mxu0 0.0
        %735 = vmatpush.msra.mxu0 0.0
        %736 = vmatpush.msra.mxu0 0.0
        %737 = vmatpush.msra.mxu0 0.0
        %738 = vmatpush.msra.mxu0 %v726
        %739 = vmatpush.msra.mxu0 %v725
        %740 = vmatpush.msra.mxu0 %v724
        %741 = vmatpush.msra.mxu0 %v723
        %742 = vmatpush.msra.mxu0 %v722
        %743 = vmatpush.msra.mxu0 %v721
        %744 = vmatpush.msra.mxu0 %v720
        %745 = vmatpush.msra.mxu0 %v719
        %746 = vmatmul.f32.gmra.mxu0 %v728
        %v747 = vpop.f32.mrf.mxu0
        %v748 = vadd.f32 0.0, %v747
        %749 = vdwg.mxu0
        %v750 = vadd.f32 %v559, %v748
        %v751 = vld [vmem:[%s13] sm:$0x1]
        %v753 = vperm.slane %v751, 0
        %v755 = vadd.f32 %v750, %v753
        %756 = vst.msk [vmem:[%s523] sm:$0xff] %vm530, %v755
        %s757 = sand.u32 %s346, 1
        %s758 = scalar_lea.sflag [#allocation4], %s757
        %s759 = sand.u32 %s346, 1
        %s760 = smul.addr %s759, 8
        %s761 = scalar_lea.vmem [#allocation7], %s760
        // Predicated region
        $region85: #{tpu_custom_call.1} parent=75 // pred_check
          %p762 = pneg %p356
        $region86: #{tpu_custom_call.1} parent=75 // pred_check_branch
          %764 = sbr.rel (%p762) target = $region88
        $region87: #{tpu_custom_call.1} parent=75 // pred_region
          %766 = vsyncadd %s758, 0
          %s767 = smul.addr %s34, 8
          %s768 = scalar_lea.hbm %s14, %s767
          %s770 = sshll.u32 %s761, 4
          %s771 = int_to_ptr.vmem [resolvable:$true] %s770
          %s772 = sshll.u32 %s768, 4
          %s773 = int_to_ptr.hbm [resolvable:$true] %s772
          %775 = dma.vmem_to_hbm [thread:$0]  %s771, 128, %s773, %s758
        $region88: #{tpu_custom_call.1} parent=75 // pred_fallthru
          _
      $region76: #{tpu_custom_call.1} parent=5 // pred_fallthru
        _
      %p776 = scmp.le.s32.totalorder 2, %s29
      // Predicated region
      $region89: #{tpu_custom_call.1} parent=5 // pred_check
        %p777 = pneg %p776
      $region90: #{tpu_custom_call.1} parent=5 // pred_check_branch
        %779 = sbr.rel (%p777) target = $region92
      $region91: #{tpu_custom_call.1} parent=5 // pred_region
        %s780 = ssub.s32 %s29, 2
        // Predicated region
        $region93: #{tpu_custom_call.1} parent=91 // pred_check
          %p781 = pneg %p362
        $region94: #{tpu_custom_call.1} parent=91 // pred_check_branch
          %783 = sbr.rel (%p781) target = $region96
        $region95: #{tpu_custom_call.1} parent=91 // pred_region
          %s784 = sand.u32 %s347, 1
          %s785 = scalar_lea.sflag [#allocation4], %s784
          %s786 = sand.u32 %s347, 1
          %s787 = smul.addr %s786, 8
          %s788 = scalar_lea.vmem [#allocation7], %s787
          %790 = dma.done %s785, 128
        $region96: #{tpu_custom_call.1} parent=91 // pred_fallthru
          _
      $region92: #{tpu_custom_call.1} parent=5 // pred_fallthru
        _
    $region6: #{tpu_custom_call.1} parent=1 // loop_footer
      %s33 = sadd.s32 1, %s29
    $region7: #{tpu_custom_call.1} parent=1 // loop_footer_branch
      %28 = sbr.rel target = $region3
    $region8: #{tpu_custom_call.1} parent=1 // loop_exit
      _
    %791 = vsyncpa [#allocation3], 1
    %s792 = scalar_lea.sflag [#allocation3], 1
    %793 = vsyncpa %s792, 1
    %794 = vsyncpa [#allocation6], 1
    %s795 = scalar_lea.sflag [#allocation6], 1
    %796 = vsyncpa %s795, 1
    %797 = vsyncpa [#allocation4], 1
    %s798 = scalar_lea.sflag [#allocation4], 1
    %799 = vsyncpa %s798, 1

</llo_original>
